<compile_context>
chip_gen: v6e
topology: v6e:2x2x1
jax: 0.10.0
libtpu: 0.0.40
codegen_flags: <defaults>
</compile_context>

<pallas_src>
import math

import jax
import jax.numpy as jnp
from jax.experimental import pallas as pl
from jax.experimental.pallas import tpu as pltpu


def _round_up(a: int, b: int) -> int:
    return (a + b - 1) // b * b


def _build_pe(embed_size: int, max_len: int = 128, dtype=jnp.float32) -> jnp.ndarray:
    """Sinusoidal positional-encoding table of shape (round_up(max_len,128), E).

    Rows are padded up to a multiple of 128 (filled with valid sinusoids) so the
    kernel can always window the buffer via BlockSpec with no per-call slice
    copy.  Stored in the model dtype to halve pe HBM reads for bf16 models.
    """
    max_len_p = _round_up(max_len, 128)
    position = jnp.arange(max_len_p, dtype=jnp.float32)[:, None]          # (max_len_p, 1)
    div_term = jnp.exp(
        jnp.arange(0, embed_size, 2, dtype=jnp.float32)
        * (-math.log(10000.0) / embed_size)
    )
    pe = jnp.zeros((max_len_p, embed_size), dtype=jnp.float32)
    pe = pe.at[:, 0::2].set(jnp.sin(position * div_term))
    # Guard for odd embed_size: only floor(E/2) cos columns exist.
    pe = pe.at[:, 1::2].set(jnp.cos(position * div_term[: embed_size // 2]))
    return pe.astype(dtype)


def _vmem_limit_bytes() -> int:
    """Per-generation scoped-VMEM allowance: ~75% of physical, capped at 96 MiB."""
    cap = 64 << 20                      # conservative default (v7x: 64 MiB / TensorCore)
    try:
        info_cap = int(pltpu.get_tpu_info().vmem_capacity_bytes)
        if info_cap >= (16 << 20):
            cap = info_cap
    except Exception:
        pass                            # non-TPU trace / missing API -> keep default
    return min((cap * 3) // 4, 96 << 20)


def _plan_row_tiles(B: int, R: int, C: int, itemsize: int, sub: int,
                    block_budget: int):
    """Pick (TB, TR) for (TB, TR, C) x-blocks.

    TR is a multiple of `sub` (dense sublanes) and never exceeds R; the block
    stays within `block_budget` bytes; and we prefer >= 2 total grid steps so
    both v7x TensorCores get work.
    """
    row_bytes = C * itemsize
    # Batch tile: whole batch per block unless even a minimal (sub-row) slab
    # would blow the per-block budget.  (Truly pathological C could still
    # exceed the budget at TB=1/TR=sub; not handled.)
    if B * sub * row_bytes <= block_budget:
        TB = B
    else:
        TB = max(1, block_budget // (sub * row_bytes))
    tr_cap = (R // sub) * sub                         # R >= sub on this path
    TR = max(sub, (block_budget // max(1, TB * row_bytes)) // sub * sub)
    TR = min(TR, tr_cap)
    # Keep at least 2 grid steps when the data allows (v7x has 2 TensorCores).
    if pl.cdiv(R, TR) * pl.cdiv(B, TB) < 2 and R > sub:
        TR = min(tr_cap, max(sub, _round_up(pl.cdiv(R, 2), sub)))
    return TB, TR


def _add_pe_bcast_kernel(x_ref, pe_ref, o_ref):
    # x_ref/o_ref: (TB, TR, C); pe_ref: (TR, C) broadcast over the batch tile.
    x = x_ref[...].astype(jnp.float32)
    pe = pe_ref[...].astype(jnp.float32)
    o_ref[...] = (x + pe[None]).astype(o_ref.dtype)


def _add_pe_2d_kernel(x_ref, pe_ref, o_ref):
    # x_ref/o_ref: (B, TL); pe_ref: (1, TL) broadcast over sublanes.
    x = x_ref[...].astype(jnp.float32)
    pe = pe_ref[...].astype(jnp.float32)
    o_ref[...] = (x + pe).astype(o_ref.dtype)


def positional_encoding(x: jnp.ndarray, pe_buf: jnp.ndarray) -> jnp.ndarray:
    """x: (B, S, E); pe_buf: (max_len_p, E) from _build_pe.  Returns x + pe[:S]."""
    B, S, E = x.shape
    max_len_p, e_pe = pe_buf.shape
    assert e_pe == E, "pe buffer embed size mismatch"
    assert S <= max_len_p, "sequence length exceeds max_len of the pe buffer"

    itemsize = x.dtype.itemsize
    sub = 8 * max(1, 4 // itemsize)      # dense sublane quantum: 8 f32 / 16 bf16 / 32 int8
    vmem_limit = _vmem_limit_bytes()
    block_budget = vmem_limit // 8       # 2x(in) + 2x(out) + 2x(pe) <= 3/4 of the limit

    L = S * E
    # Fold just enough sequence positions into the lane axis to make it a
    # multiple of 128 (lane-dense, unmasked stores).
    k = 128 // math.gcd(E, 128)
    if S % k == 0:
        C = E * k
    else:
        C = E        # TODO(synk): S*E % 128 != 0 -> lane-masked stores on this rare path.
    R = L // C
    Rmax = (max_len_p * E) // C          # exact: max_len_p is a multiple of 128

    if R >= sub:
        # ---- Main path: sublane- and lane-dense tiles ------------------------
        TB, TR = _plan_row_tiles(B, R, C, itemsize, sub, block_budget)
        x3 = x.reshape(B, R, C)          # free row-major view
        pe2 = pe_buf.reshape(Rmax, C)    # free; first R rows == pe[:S] flattened
        # Rows outer, batch inner: the pe block index is constant along the
        # inner axis, so each pe tile is DMA'd once per row tile.
        grid = (pl.cdiv(R, TR), pl.cdiv(B, TB))
        out = pl.pallas_call(
            _add_pe_bcast_kernel,
            out_shape=jax.ShapeDtypeStruct((B, R, C), x.dtype),
            grid_spec=pltpu.PrefetchScalarGridSpec(
                num_scalar_prefetch=0,
                grid=grid,
                in_specs=[
                    pl.BlockSpec((TB, TR, C), lambda i, b: (b, i, 0)),   # x tile
                    pl.BlockSpec((TR, C), lambda i, b: (i, 0)),          # pe tile (batch-bcast)
                ],
                out_specs=pl.BlockSpec((TB, TR, C), lambda i, b: (b, i, 0)),
            ),
            input_output_aliases={0: 0},     # in-place add on x's (donated) buffer
            compiler_params=pltpu.CompilerParams(
                dimension_semantics=("parallel", "parallel"),
                vmem_limit_bytes=vmem_limit,
            ),
        )(x3, pe2)
        return out.reshape(B, S, E)

    # ---- Small-problem path: flatten each example to one long lane vector ----
    # (fewer than `sub` folded rows per example -> sublane padding of B is
    # irrelevant at these sizes)
    x2 = x.reshape(B, L)
    Lmax = max_len_p * E
    padded_b = _round_up(B, sub)
    if L % 128 == 0:
        pe2 = pe_buf.reshape(1, Lmax)    # zero-copy window of the first L lanes
        TL = max(128, min(L, (block_budget // max(1, padded_b * itemsize)) // 128 * 128))
    else:
        pe2 = pe_buf.reshape(1, Lmax)[:, :L]   # tiny slice copy; only on this rare path
        TL = L
    grid = (pl.cdiv(L, TL),)
    out = pl.pallas_call(
        _add_pe_2d_kernel,
        out_shape=jax.ShapeDtypeStruct((B, L), x.dtype),
        grid_spec=pltpu.PrefetchScalarGridSpec(
            num_scalar_prefetch=0,
            grid=grid,
            in_specs=[
                pl.BlockSpec((B, TL), lambda t: (0, t)),
                pl.BlockSpec((1, TL), lambda t: (0, t)),
            ],
            out_specs=pl.BlockSpec((B, TL), lambda t: (0, t)),
        ),
        input_output_aliases={0: 0},
        compiler_params=pltpu.CompilerParams(
            dimension_semantics=("parallel",),
            vmem_limit_bytes=vmem_limit,
        ),
    )(x2, pe2)
    return out.reshape(B, S, E)


if __name__ == "__main__":
    max_len = 128
    # Donating x lets input_output_aliases genuinely reuse x's HBM buffer.
    fwd = jax.jit(positional_encoding, donate_argnums=(0,))

    # First shape exercises the small-problem 2D path; the second exercises the
    # tiled sublane/lane-dense 3D path.
    for (B, S, E) in [(2, 8, 32), (2, 64, 32)]:
        key = jax.random.PRNGKey(0)
        x = jax.random.normal(key, (B, S, E), dtype=jnp.float32)
        pe_buf = _build_pe(E, max_len, dtype=x.dtype)

        # Reference (plain JAX), materialized before x is donated below.
        ref = jax.block_until_ready(x + pe_buf[None, :S, :])

        out = jax.block_until_ready(fwd(x, pe_buf))

        assert out.shape == (B, S, E)
        assert jnp.allclose(out, ref, atol=1e-6), f"mismatch vs reference at {(B, S, E)}"

    print("KERNEL_OK")
</pallas_src>

<mosaic_0001>
module attributes {stable_mosaic.version = 11 : i64} {
  func.func @_add_pe_2d_kernel(%arg0: i32, %arg1: memref<2x256xf32, #tpu.memory_space<vmem>>, %arg2: memref<1x256xf32, #tpu.memory_space<vmem>>, %arg3: memref<2x256xf32, #tpu.memory_space<vmem>>) attributes {dimension_semantics = [#tpu.dimension_semantics<parallel>], iteration_bounds = array<i64: 1>, scalar_prefetch = 0 : i64, scratch_operands = 0 : i64, tpu.core_type = #tpu.core_type<tc>, window_params = [{transform_indices = @transform_0, window_bounds = array<i64: 2, 256>}, {transform_indices = @transform_1, window_bounds = array<i64: 1, 256>}, {transform_indices = @transform_2, window_bounds = array<i64: 2, 256>}]} {
    %c0 = arith.constant 0 : index
    %c0_0 = arith.constant 0 : index
    %0 = vector.load %arg1[%c0, %c0_0] : memref<2x256xf32, #tpu.memory_space<vmem>>, vector<2x256xf32>
    %c0_1 = arith.constant 0 : index
    %c0_2 = arith.constant 0 : index
    %1 = vector.load %arg2[%c0_1, %c0_2] : memref<1x256xf32, #tpu.memory_space<vmem>>, vector<1x256xf32>
    %2 = vector.broadcast %1 : vector<1x256xf32> to vector<2x256xf32>
    %3 = arith.addf %0, %2 : vector<2x256xf32>
    %c0_3 = arith.constant 0 : index
    %c0_4 = arith.constant 0 : index
    %4 = vector.load %arg3[%c0_3, %c0_4] : memref<2x256xf32, #tpu.memory_space<vmem>>, vector<2x256xf32>
    tpu.vector_store %arg3[%c0_3, %c0_4], %3 {strides = array<i32>} : memref<2x256xf32, #tpu.memory_space<vmem>>, vector<2x256xf32>,
    return
  }
  func.func @transform_0(%arg0: i32) -> (i32, i32) {
    %c0_i32 = arith.constant 0 : i32
    %c0_i32_0 = arith.constant 0 : i32
    return %c0_i32, %arg0 : i32, i32
  }
  func.func @transform_1(%arg0: i32) -> (i32, i32) {
    %c0_i32 = arith.constant 0 : i32
    %c0_i32_0 = arith.constant 0 : i32
    return %c0_i32, %arg0 : i32, i32
  }
  func.func @transform_2(%arg0: i32) -> (i32, i32) {
    %c0_i32 = arith.constant 0 : i32
    %c0_i32_0 = arith.constant 0 : i32
    return %c0_i32, %arg0 : i32, i32
  }
}

</mosaic_0001>

<llo_original>
// kernel: positional_encoding.1
$region0: #{positional_encoding.1}
  #allocation0 [shape = 'u32[]', space=smem, size = 0x4, offset = 0x4, fixed_abs, tag = 'smem constant byte address 0x4 - core index']
  #allocation1 [shape = 'u32[144,128]{1,0:T(1,128)}', space=vmem, size = 0x12000, scoped, tag = 'internal scratch']
  %s0 = inlined_call_operand.vmem [shape: f32[2,256], index: 0, kind: input, shape index: {}, may-alias: {0,2}]
  %s1 = inlined_call_operand.vmem [shape: f32[1,4096], index: 1, kind: input, shape index: {}]
  %s2 = inlined_call_operand.vmem [shape: f32[2,256], index: 2, kind: output, shape index: {}, may-alias: {0,2}]
  %s3 = sld [smem:[#allocation0]]
  $region18: #{positional_encoding.1} parent=0
    _
  %s5 = ssub.s32 1, %s3
  %s6 = scalar_select 0, %s5, %s3
  // Predicated region
  $region2: #{positional_encoding.1} parent=0 // pred_check
    _
  $region3: #{positional_encoding.1} parent=0 // pred_check_branch
    %8 = sbr.rel (0) target = $region5
  $region4: #{positional_encoding.1} parent=0 // pred_region
    _
  $region5: #{positional_encoding.1} parent=0 // pred_fallthru
    _
  // Predicated region
  $region6: #{positional_encoding.1} parent=0 // pred_check
    _
  $region7: #{positional_encoding.1} parent=0 // pred_check_branch
    %10 = sbr.rel (0) target = $region9
  $region8: #{positional_encoding.1} parent=0 // pred_region
    _
  $region9: #{positional_encoding.1} parent=0 // pred_fallthru
    _
  %v11 = vld [vmem:[%s0] sm:$0xf]
  %v12 = vld [vmem:[%s1] sm:$0x3]
  %v14 = vlaneseq
  %v15 = vshrl.u32 %v14, 7
  %v16 = vsub.s32 0, %v15
  %v17 = vrot.slane %v12, %v16
  %v18 = vlaneseq
  %v19 = vshrl.u32 %v18, 7
  %v20 = vsub.s32 1, %v19
  %v21 = vrot.slane %v12, %v20
  %v22 = vcombine.low %v17, %v21
  %v24 = vunpack.c.l.s4 1983009808
  %v25 = vunpack.c.0.s8 %v24
  %v26 = vlaneseq
  %v27 = vshrl.u32 %v26, 7
  %v28 = vsub.s32 %v25, %v27
  %v29 = vrot.slane %v22, %v28
  %v31 = vadd.f32 %v11, %v29
  %32 = vst [vmem:[%s2] sm:$0xf] %v31
  // Predicated region
  $region10: #{positional_encoding.1} parent=0 // pred_check
    _
  $region11: #{positional_encoding.1} parent=0 // pred_check_branch
    %34 = sbr.rel (0) target = $region13
  $region12: #{positional_encoding.1} parent=0 // pred_region
    _
  $region13: #{positional_encoding.1} parent=0 // pred_fallthru
    _
  // Predicated region
  $region14: #{positional_encoding.1} parent=0 // pred_check
    _
  $region15: #{positional_encoding.1} parent=0 // pred_check_branch
    %36 = sbr.rel (0) target = $region17
  $region16: #{positional_encoding.1} parent=0 // pred_region
    _
  $region17: #{positional_encoding.1} parent=0 // pred_fallthru
    _

</llo_original>
